<compile_context>
chip_gen: v5e
topology: v5e:2x2
jax: 0.10.0
libtpu: 0.0.40
codegen_flags: <defaults>
</compile_context>

<pallas_src>
import functools

import jax
import jax.numpy as jnp
from jax import lax
from jax.experimental import pallas as pl
from jax.experimental.pallas import tpu as pltpu

IN_DIM = 28 * 28     # 784
HID = 128
OUT = 10
OUT_PAD = 128        # lane-dense padded width for the second matmul


def _round_up(x, m):
    return (x + m - 1) // m * m


def _cdiv(a, b):
    return -(-a // b)


def smolnet_kernel(x_ref, w1_ref, w2_ref, o_ref):
    # ---- Linear 1 (bias-free) + ReLU: cast f32 -> bf16 in-kernel, f32 acc ----
    x_bf = x_ref[...].astype(jnp.bfloat16)
    h = jnp.dot(x_bf, w1_ref[...], preferred_element_type=jnp.float32)
    h = jnp.maximum(h, 0.0)

    # ---- Linear 2 (bias-free) into a lane-dense 128-wide logits slab ----
    logits = jnp.dot(h.astype(jnp.bfloat16), w2_ref[...],
                     preferred_element_type=jnp.float32)

    # ---- log_softmax over the real 10 classes (mask padded lanes) ----
    col = lax.broadcasted_iota(jnp.int32, logits.shape, 1)
    masked = jnp.where(col < OUT, logits, -jnp.inf)
    m = jnp.max(masked, axis=1, keepdims=True)
    shifted = masked - m                      # padded lanes -> -inf
    lse = jnp.log(jnp.sum(jnp.exp(shifted), axis=1, keepdims=True))

    # Store only the 10 real columns (narrow f32 output, no wrapper slice).
    o_ref[...] = (shifted - lse)[:, :OUT].astype(o_ref.dtype)


@functools.partial(jax.jit, static_argnames=("tb",))
def smolnet_forward(x, w1, w2, *, tb=1024):
    """x: (B, 784) f32, w1: (784, 128), w2: (128, 10)  ->  (B, 10) float32."""
    B = x.shape[0]

    # Batch tile: aim for >=2 grid tiles (v7x megacore), multiple of 16 for
    # bf16 sublane packing, never silly-large for tiny B. TB=1024 default fits
    # all generations' scoped VMEM without raising vmem_limit_bytes
    # (double-buffered f32 x: 2*1024*784*4 B ~= 6.3 MiB).
    TB = min(tb, _round_up(_cdiv(B, 2), 16), _round_up(B, 8))
    TB = max(TB, 8)
    grid = _cdiv(B, TB)

    x = x.astype(jnp.float32)                    # no-op if already f32
    w1_bf = w1.astype(jnp.bfloat16)
    # Zero-pad second layer 10 -> 128 output columns (one-time, tiny).
    w2_bf = jnp.pad(w2.astype(jnp.bfloat16), ((0, 0), (0, OUT_PAD - OUT)))

    cost = pl.CostEstimate(
        flops=2 * B * (IN_DIM * HID + HID * OUT_PAD),
        transcendentals=B * (OUT_PAD + 1),
        bytes_accessed=(B * IN_DIM * 4           # f32 x read
                        + IN_DIM * HID * 2       # bf16 w1
                        + HID * OUT_PAD * 2      # bf16 w2 (padded)
                        + B * OUT * 4),          # narrow f32 output
    )

    out = pl.pallas_call(
        smolnet_kernel,
        out_shape=jax.ShapeDtypeStruct((B, OUT), jnp.float32),
        grid_spec=pltpu.PrefetchScalarGridSpec(
            num_scalar_prefetch=0,
            grid=(grid,),
            in_specs=[
                pl.BlockSpec((TB, IN_DIM), lambda i: (i, 0)),     # x: streamed
                pl.BlockSpec((IN_DIM, HID), lambda i: (0, 0)),    # w1: resident
                pl.BlockSpec((HID, OUT_PAD), lambda i: (0, 0)),   # w2: resident
            ],
            out_specs=pl.BlockSpec((TB, OUT), lambda i: (i, 0)),
        ),
        compiler_params=pltpu.CompilerParams(
            dimension_semantics=("parallel",)),
        cost_estimate=cost,
    )(x, w1_bf, w2_bf)

    return out


def init_params(key):
    # torch.nn.Linear default init: U(-1/sqrt(fan_in), 1/sqrt(fan_in)).
    # Stored transposed relative to PyTorch's (out, in) so the kernel can do
    # x @ w directly on the MXU.
    k1, k2 = jax.random.split(key)
    b1 = 1.0 / jnp.sqrt(jnp.float32(IN_DIM))
    b2 = 1.0 / jnp.sqrt(jnp.float32(HID))
    w1 = jax.random.uniform(k1, (IN_DIM, HID), jnp.float32, -b1, b1)
    w2 = jax.random.uniform(k2, (HID, OUT), jnp.float32, -b2, b2)
    return w1, w2


def reference_forward(x, w1, w2):
    h = jnp.maximum(x @ w1, 0.0)
    logits = h @ w2
    return jax.nn.log_softmax(logits, axis=1)


if __name__ == "__main__":
    key = jax.random.PRNGKey(0)
    kx, kp = jax.random.split(key)

    B = 8
    x = jax.random.normal(kx, (B, IN_DIM), jnp.float32)
    w1, w2 = init_params(kp)

    out = jax.block_until_ready(smolnet_forward(x, w1, w2))
    ref = reference_forward(x, w1, w2)

    assert out.shape == (B, OUT)
    # bf16 MXU operands -> loosened tolerance vs. the pure-f32 reference.
    assert jnp.allclose(out, ref, atol=2e-2, rtol=2e-2)

    print("KERNEL_OK")
</pallas_src>

<mosaic_0001>
module attributes {stable_mosaic.version = 11 : i64} {
  func.func @smolnet_kernel(%arg0: i32, %arg1: memref<8x784xf32, #tpu.memory_space<vmem>>, %arg2: memref<784x128xbf16, #tpu.memory_space<vmem>>, %arg3: memref<128x128xbf16, #tpu.memory_space<vmem>>, %arg4: memref<8x10xf32, #tpu.memory_space<vmem>>) attributes {dimension_semantics = [#tpu.dimension_semantics<parallel>], iteration_bounds = array<i64: 1>, scalar_prefetch = 0 : i64, scratch_operands = 0 : i64, tpu.core_type = #tpu.core_type<tc>, window_params = [{transform_indices = @transform_0, window_bounds = array<i64: 8, 784>}, {pipeline_mode = #tpu.pipeline_mode<synchronous>, transform_indices = @transform_1, window_bounds = array<i64: 784, 128>}, {pipeline_mode = #tpu.pipeline_mode<synchronous>, transform_indices = @transform_2, window_bounds = array<i64: 128, 128>}, {transform_indices = @transform_3, window_bounds = array<i64: 8, 10>}]} {
    %c0 = arith.constant 0 : index
    %c0_0 = arith.constant 0 : index
    %0 = vector.load %arg1[%c0, %c0_0] : memref<8x784xf32, #tpu.memory_space<vmem>>, vector<8x784xf32>
    %1 = arith.truncf %0 : vector<8x784xf32> to vector<8x784xbf16>
    %c0_1 = arith.constant 0 : index
    %c0_2 = arith.constant 0 : index
    %2 = vector.load %arg2[%c0_1, %c0_2] : memref<784x128xbf16, #tpu.memory_space<vmem>>, vector<784x128xbf16>
    %cst = arith.constant dense<0.000000e+00> : vector<8x128xf32>
    %3 = tpu.matmul %1, %2, %cst {dimension_numbers = #tpu.dot_dimension_numbers<[1], [0], [0], [1], [0, 0, 1, 1], [], []>} : vector<8x784xbf16>, vector<784x128xbf16>, vector<8x128xf32> -> vector<8x128xf32>
    %cst_3 = arith.constant 0.000000e+00 : f32
    %4 = vector.broadcast %cst_3 : f32 to vector<8x128xf32>
    %5 = arith.maximumf %3, %4 : vector<8x128xf32>
    %6 = arith.truncf %5 : vector<8x128xf32> to vector<8x128xbf16>
    %c0_4 = arith.constant 0 : index
    %c0_5 = arith.constant 0 : index
    %7 = vector.load %arg3[%c0_4, %c0_5] : memref<128x128xbf16, #tpu.memory_space<vmem>>, vector<128x128xbf16>
    %cst_6 = arith.constant dense<0.000000e+00> : vector<8x128xf32>
    %8 = tpu.matmul %6, %7, %cst_6 {dimension_numbers = #tpu.dot_dimension_numbers<[1], [0], [0], [1], [0, 0, 1, 1], [], []>} : vector<8x128xbf16>, vector<128x128xbf16>, vector<8x128xf32> -> vector<8x128xf32>
    %9 = tpu.iota {dimensions = array<i32: 1>} : vector<8x128xi32>
    %c10_i32 = arith.constant 10 : i32
    %10 = vector.broadcast %c10_i32 : i32 to vector<8x128xi32>
    %11 = arith.cmpi slt, %9, %10 : vector<8x128xi32>
    %cst_7 = arith.constant 0xFF800000 : f32
    %12 = vector.broadcast %cst_7 : f32 to vector<8x128xf32>
    %13 = arith.select %11, %8, %12 : vector<8x128xi1>, vector<8x128xf32>
    %cst_8 = arith.constant dense<0xFF800000> : vector<8xf32>
    %14 = vector.multi_reduction <maximumf>, %13, %cst_8 [1] : vector<8x128xf32> to vector<8xf32>
    %15 = vector.shape_cast %14 : vector<8xf32> to vector<8x1xf32>
    %16 = vector.broadcast %15 : vector<8x1xf32> to vector<8x128xf32>
    %17 = arith.subf %13, %16 : vector<8x128xf32>
    %18 = math.exp %17 : vector<8x128xf32>
    %cst_9 = arith.constant dense<0.000000e+00> : vector<8xf32>
    %19 = vector.multi_reduction <add>, %18, %cst_9 [1] : vector<8x128xf32> to vector<8xf32>
    %20 = vector.shape_cast %19 : vector<8xf32> to vector<8x1xf32>
    %21 = math.log %20 : vector<8x1xf32>
    %22 = vector.broadcast %21 : vector<8x1xf32> to vector<8x128xf32>
    %23 = arith.subf %17, %22 : vector<8x128xf32>
    %24 = vector.extract_strided_slice %23 {offsets = [0, 0], sizes = [8, 10], strides = [1, 1]} : vector<8x128xf32> to vector<8x10xf32>
    %c0_10 = arith.constant 0 : index
    %c0_11 = arith.constant 0 : index
    %25 = vector.load %arg4[%c0_10, %c0_11] : memref<8x10xf32, #tpu.memory_space<vmem>>, vector<8x10xf32>
    tpu.vector_store %arg4[%c0_10, %c0_11], %24 {strides = array<i32>} : memref<8x10xf32, #tpu.memory_space<vmem>>, vector<8x10xf32>,
    return
  }
  func.func @transform_0(%arg0: i32) -> (i32, i32) {
    %c0_i32 = arith.constant 0 : i32
    %c0_i32_0 = arith.constant 0 : i32
    return %arg0, %c0_i32 : i32, i32
  }
  func.func @transform_1(%arg0: i32) -> (i32, i32) {
    %c0_i32 = arith.constant 0 : i32
    %c0_i32_0 = arith.constant 0 : i32
    %c0_i32_1 = arith.constant 0 : i32
    return %c0_i32, %c0_i32_0 : i32, i32
  }
  func.func @transform_2(%arg0: i32) -> (i32, i32) {
    %c0_i32 = arith.constant 0 : i32
    %c0_i32_0 = arith.constant 0 : i32
    %c0_i32_1 = arith.constant 0 : i32
    return %c0_i32, %c0_i32_0 : i32, i32
  }
  func.func @transform_3(%arg0: i32) -> (i32, i32) {
    %c0_i32 = arith.constant 0 : i32
    %c0_i32_0 = arith.constant 0 : i32
    return %arg0, %c0_i32 : i32, i32
  }
}

</mosaic_0001>

<llo_original>
// kernel: smolnet_forward.1
$region0: #{smolnet_forward.1}
  #allocation0 [shape = 'u32[]', space=smem, size = 0x4, offset = 0x4, fixed_abs, tag = 'smem constant byte address 0x4 - core index']
  #allocation1 [shape = 'u32[72,128]{1,0:T(1,128)}', space=vmem, size = 0x9000, scoped, tag = 'internal scratch']
  %s0 = inlined_call_operand.vmem [shape: f32[8,784], index: 0, kind: input, shape index: {}]
  %s1 = inlined_call_operand.vmem [shape: bf16[784,128], index: 1, kind: input, shape index: {}]
  %s2 = inlined_call_operand.vmem [shape: bf16[128,128], index: 2, kind: input, shape index: {}]
  %s3 = inlined_call_operand.hbm [shape: f32[8,10], index: 3, kind: output, shape index: {}]
  %s4 = sld [smem:[#allocation0]]
  $region22: #{smolnet_forward.1} parent=0
    _
  %s6 = ssub.s32 1, %s4
  %s7 = scalar_select 0, %s6, %s4
  $region1: #{smolnet_forward.1} parent=0
    #allocation2 [shape = 'u8[4096]{0}', space=vmem, size = 0x1000, scoped, tag = 'output window, operand 0, single buffered']
    #allocation3 [shape = 's32[1]{0}', space=sflag, size = 0x4, scoped, tag = 'scoped memory for smolnet_forward.1']
    %8 = vsyncpa [#allocation3], 0
    // Predicated region
    $region2: #{smolnet_forward.1} parent=1 // pred_check
      _
    $region3: #{smolnet_forward.1} parent=1 // pred_check_branch
      %10 = sbr.rel (0) target = $region5
    $region4: #{smolnet_forward.1} parent=1 // pred_region
      _
    $region5: #{smolnet_forward.1} parent=1 // pred_fallthru
      _
    // Predicated region
    $region6: #{smolnet_forward.1} parent=1 // pred_check
      _
    $region7: #{smolnet_forward.1} parent=1 // pred_check_branch
      %12 = sbr.rel (0) target = $region9
    $region8: #{smolnet_forward.1} parent=1 // pred_region
      _
    $region9: #{smolnet_forward.1} parent=1 // pred_fallthru
      _
    // Predicated region
    $region10: #{smolnet_forward.1} parent=1 // pred_check
      _
    $region11: #{smolnet_forward.1} parent=1 // pred_check_branch
      %14 = sbr.rel (0) target = $region13
    $region12: #{smolnet_forward.1} parent=1 // pred_region
      _
    $region13: #{smolnet_forward.1} parent=1 // pred_fallthru
      _
    %v16 = vld [vmem:[%s0] sm:$0xff]
    %v17 = vld [vmem:[%s0 + $0x8] sm:$0xff]
    %v18 = vld [vmem:[%s0 + $0x10] sm:$0xff]
    %v19 = vld [vmem:[%s0 + $0x18] sm:$0xff]
    %v20 = vld [vmem:[%s0 + $0x20] sm:$0xff]
    %v21 = vld [vmem:[%s0 + $0x28] sm:$0xff]
    %v22 = vld [vmem:[%s0 + $0x30] sm:$0xff]
    %v23 = vpack.c.bf16 %v16, %v16
    %v24 = vpack.c.bf16 %v17, %v17
    %v25 = vpack.c.bf16 %v18, %v18
    %v26 = vpack.c.bf16 %v19, %v19
    %v27 = vpack.c.bf16 %v20, %v20
    %v28 = vpack.c.bf16 %v21, %v21
    %v29 = vpack.c.bf16 %v22, %v22
    %v30 = vld [vmem:[%s1] sm:$0xf]
    %v31 = vld [vmem:[%s1 + $0x4] sm:$0xf]
    %v32 = vld [vmem:[%s1 + $0x8] sm:$0xf]
    %v33 = vld [vmem:[%s1 + $0xc] sm:$0xf]
    %v34 = vld [vmem:[%s1 + $0x10] sm:$0xf]
    %v35 = vld [vmem:[%s1 + $0x14] sm:$0xf]
    %v36 = vld [vmem:[%s1 + $0x18] sm:$0xf]
    %v37 = vld [vmem:[%s1 + $0x1c] sm:$0xf]
    %v38 = vld [vmem:[%s1 + $0x20] sm:$0xf]
    %v39 = vld [vmem:[%s1 + $0x24] sm:$0xf]
    %v40 = vld [vmem:[%s1 + $0x28] sm:$0xf]
    %v41 = vld [vmem:[%s1 + $0x2c] sm:$0xf]
    %v42 = vld [vmem:[%s1 + $0x30] sm:$0xf]
    %v43 = vld [vmem:[%s1 + $0x34] sm:$0xf]
    %v44 = vld [vmem:[%s1 + $0x38] sm:$0xf]
    %v45 = vld [vmem:[%s1 + $0x3c] sm:$0xf]
    %v46 = vld [vmem:[%s1 + $0x40] sm:$0xf]
    %v47 = vld [vmem:[%s1 + $0x44] sm:$0xf]
    %v48 = vld [vmem:[%s1 + $0x48] sm:$0xf]
    %v49 = vld [vmem:[%s1 + $0x4c] sm:$0xf]
    %v50 = vld [vmem:[%s1 + $0x50] sm:$0xf]
    %v51 = vld [vmem:[%s1 + $0x54] sm:$0xf]
    %v52 = vld [vmem:[%s1 + $0x58] sm:$0xf]
    %v53 = vld [vmem:[%s1 + $0x5c] sm:$0xf]
    %v54 = vld [vmem:[%s1 + $0x60] sm:$0xf]
    %v55 = vld [vmem:[%s1 + $0x64] sm:$0xf]
    %v56 = vld [vmem:[%s1 + $0x68] sm:$0xf]
    %v57 = vld [vmem:[%s1 + $0x6c] sm:$0xf]
    %v58 = vld [vmem:[%s1 + $0x70] sm:$0xf]
    %v59 = vld [vmem:[%s1 + $0x74] sm:$0xf]
    %v60 = vld [vmem:[%s1 + $0x78] sm:$0xf]
    %v61 = vld [vmem:[%s1 + $0x7c] sm:$0xf]
    %v62 = vld [vmem:[%s1 + $0x80] sm:$0xf]
    %v63 = vld [vmem:[%s1 + $0x84] sm:$0xf]
    %v64 = vld [vmem:[%s1 + $0x88] sm:$0xf]
    %v65 = vld [vmem:[%s1 + $0x8c] sm:$0xf]
    %v66 = vld [vmem:[%s1 + $0x90] sm:$0xf]
    %v67 = vld [vmem:[%s1 + $0x94] sm:$0xf]
    %v68 = vld [vmem:[%s1 + $0x98] sm:$0xf]
    %v69 = vld [vmem:[%s1 + $0x9c] sm:$0xf]
    %v70 = vld [vmem:[%s1 + $0xa0] sm:$0xf]
    %v71 = vld [vmem:[%s1 + $0xa4] sm:$0xf]
    %v72 = vld [vmem:[%s1 + $0xa8] sm:$0xf]
    %v73 = vld [vmem:[%s1 + $0xac] sm:$0xf]
    %v74 = vld [vmem:[%s1 + $0xb0] sm:$0xf]
    %v75 = vld [vmem:[%s1 + $0xb4] sm:$0xf]
    %v76 = vld [vmem:[%s1 + $0xb8] sm:$0xf]
    %v77 = vld [vmem:[%s1 + $0xbc] sm:$0xf]
    %v78 = vld [vmem:[%s1 + $0xc0] sm:$0xf]
    %v79 = vld [vmem:[%s1 + $0xc4] sm:$0xf]
    %v80 = vld [vmem:[%s1 + $0xc8] sm:$0xf]
    %v81 = vld [vmem:[%s1 + $0xcc] sm:$0xf]
    %v82 = vld [vmem:[%s1 + $0xd0] sm:$0xf]
    %v83 = vld [vmem:[%s1 + $0xd4] sm:$0xf]
    %v84 = vld [vmem:[%s1 + $0xd8] sm:$0xf]
    %v85 = vld [vmem:[%s1 + $0xdc] sm:$0xf]
    %v86 = vld [vmem:[%s1 + $0xe0] sm:$0xf]
    %v87 = vld [vmem:[%s1 + $0xe4] sm:$0xf]
    %v88 = vld [vmem:[%s1 + $0xe8] sm:$0xf]
    %v89 = vld [vmem:[%s1 + $0xec] sm:$0xf]
    %v90 = vld [vmem:[%s1 + $0xf0] sm:$0xf]
    %v91 = vld [vmem:[%s1 + $0xf4] sm:$0xf]
    %v92 = vld [vmem:[%s1 + $0xf8] sm:$0xf]
    %v93 = vld [vmem:[%s1 + $0xfc] sm:$0xf]
    %v94 = vld [vmem:[%s1 + $0x100] sm:$0xf]
    %v95 = vld [vmem:[%s1 + $0x104] sm:$0xf]
    %v96 = vld [vmem:[%s1 + $0x108] sm:$0xf]
    %v97 = vld [vmem:[%s1 + $0x10c] sm:$0xf]
    %v98 = vld [vmem:[%s1 + $0x110] sm:$0xf]
    %v99 = vld [vmem:[%s1 + $0x114] sm:$0xf]
    %v100 = vld [vmem:[%s1 + $0x118] sm:$0xf]
    %v101 = vld [vmem:[%s1 + $0x11c] sm:$0xf]
    %v102 = vld [vmem:[%s1 + $0x120] sm:$0xf]
    %v103 = vld [vmem:[%s1 + $0x124] sm:$0xf]
    %v104 = vld [vmem:[%s1 + $0x128] sm:$0xf]
    %v105 = vld [vmem:[%s1 + $0x12c] sm:$0xf]
    %v106 = vld [vmem:[%s1 + $0x130] sm:$0xf]
    %v107 = vld [vmem:[%s1 + $0x134] sm:$0xf]
    %v108 = vld [vmem:[%s1 + $0x138] sm:$0xf]
    %v109 = vld [vmem:[%s1 + $0x13c] sm:$0xf]
    %v110 = vld [vmem:[%s1 + $0x140] sm:$0xf]
    %v111 = vld [vmem:[%s1 + $0x144] sm:$0xf]
    %v112 = vld [vmem:[%s1 + $0x148] sm:$0xf]
    %v113 = vld [vmem:[%s1 + $0x14c] sm:$0xf]
    %v114 = vld [vmem:[%s1 + $0x150] sm:$0xf]
    %v115 = vld [vmem:[%s1 + $0x154] sm:$0xf]
    %v116 = vld [vmem:[%s1 + $0x158] sm:$0xf]
    %v117 = vld [vmem:[%s1 + $0x15c] sm:$0xf]
    %v118 = vld [vmem:[%s1 + $0x160] sm:$0xf]
    %v119 = vld [vmem:[%s1 + $0x164] sm:$0xf]
    %v120 = vld [vmem:[%s1 + $0x168] sm:$0xf]
    %v121 = vld [vmem:[%s1 + $0x16c] sm:$0xf]
    %v122 = vld [vmem:[%s1 + $0x170] sm:$0xf]
    %v123 = vld [vmem:[%s1 + $0x174] sm:$0xf]
    %v124 = vld [vmem:[%s1 + $0x178] sm:$0xf]
    %v125 = vld [vmem:[%s1 + $0x17c] sm:$0xf]
    %v126 = vld [vmem:[%s1 + $0x180] sm:$0xf]
    %v127 = vld [vmem:[%s1 + $0x184] sm:$0xf]
    %v226 = vunpack.c.l.b16 %v30
    %v227 = vunpack.c.l.b16 %v31
    %v228 = vunpack.c.l.b16 %v32
    %v229 = vunpack.c.l.b16 %v33
    %v230 = vunpack.c.l.b16 %v34
    %v231 = vunpack.c.l.b16 %v35
    %v232 = vunpack.c.l.b16 %v36
    %v233 = vunpack.c.l.b16 %v37
    %v234 = vunpack.c.l.b16 %v38
    %v235 = vunpack.c.l.b16 %v39
    %v236 = vunpack.c.l.b16 %v40
    %v237 = vunpack.c.l.b16 %v41
    %v238 = vunpack.c.l.b16 %v42
    %v239 = vunpack.c.l.b16 %v43
    %v240 = vunpack.c.l.b16 %v44
    %v241 = vunpack.c.l.b16 %v45
    %v242 = vunpack.c.l.b16 %v46
    %v243 = vunpack.c.l.b16 %v47
    %v244 = vunpack.c.l.b16 %v48
    %v245 = vunpack.c.l.b16 %v49
    %v246 = vunpack.c.l.b16 %v50
    %v247 = vunpack.c.l.b16 %v51
    %v248 = vunpack.c.l.b16 %v52
    %v249 = vunpack.c.l.b16 %v53
    %v250 = vunpack.c.l.b16 %v54
    %v251 = vunpack.c.l.b16 %v55
    %v252 = vunpack.c.l.b16 %v56
    %v253 = vunpack.c.l.b16 %v57
    %v254 = vunpack.c.l.b16 %v58
    %v255 = vunpack.c.l.b16 %v59
    %v256 = vunpack.c.l.b16 %v60
    %v257 = vunpack.c.l.b16 %v61
    %v258 = vunpack.c.l.b16 %v62
    %v259 = vunpack.c.l.b16 %v63
    %v260 = vunpack.c.l.b16 %v64
    %v261 = vunpack.c.l.b16 %v65
    %v262 = vunpack.c.l.b16 %v66
    %v263 = vunpack.c.l.b16 %v67
    %v264 = vunpack.c.l.b16 %v68
    %v265 = vunpack.c.l.b16 %v69
    %v266 = vunpack.c.l.b16 %v70
    %v267 = vunpack.c.l.b16 %v71
    %v268 = vunpack.c.l.b16 %v72
    %v269 = vunpack.c.l.b16 %v73
    %v270 = vunpack.c.l.b16 %v74
    %v271 = vunpack.c.l.b16 %v75
    %v272 = vunpack.c.l.b16 %v76
    %v273 = vunpack.c.l.b16 %v77
    %v274 = vunpack.c.l.b16 %v78
    %v275 = vunpack.c.l.b16 %v79
    %v276 = vunpack.c.l.b16 %v80
    %v277 = vunpack.c.l.b16 %v81
    %v278 = vunpack.c.l.b16 %v82
    %v279 = vunpack.c.l.b16 %v83
    %v280 = vunpack.c.l.b16 %v84
    %v281 = vunpack.c.l.b16 %v85
    %v282 = vunpack.c.l.b16 %v86
    %v283 = vunpack.c.l.b16 %v87
    %v284 = vunpack.c.l.b16 %v88
    %v285 = vunpack.c.l.b16 %v89
    %v286 = vunpack.c.l.b16 %v90
    %v287 = vunpack.c.l.b16 %v91
    %v288 = vunpack.c.l.b16 %v92
    %v289 = vunpack.c.l.b16 %v93
    %v290 = vunpack.c.l.b16 %v94
    %v291 = vunpack.c.l.b16 %v95
    %v292 = vunpack.c.l.b16 %v96
    %v293 = vunpack.c.l.b16 %v97
    %v294 = vunpack.c.l.b16 %v98
    %v295 = vunpack.c.l.b16 %v99
    %v296 = vunpack.c.l.b16 %v100
    %v297 = vunpack.c.l.b16 %v101
    %v298 = vunpack.c.l.b16 %v102
    %v299 = vunpack.c.l.b16 %v103
    %v300 = vunpack.c.l.b16 %v104
    %v301 = vunpack.c.l.b16 %v105
    %v302 = vunpack.c.l.b16 %v106
    %v303 = vunpack.c.l.b16 %v107
    %v304 = vunpack.c.l.b16 %v108
    %v305 = vunpack.c.l.b16 %v109
    %v306 = vunpack.c.l.b16 %v110
    %v307 = vunpack.c.l.b16 %v111
    %v308 = vunpack.c.l.b16 %v112
    %v309 = vunpack.c.l.b16 %v113
    %v310 = vunpack.c.l.b16 %v114
    %v311 = vunpack.c.l.b16 %v115
    %v312 = vunpack.c.l.b16 %v116
    %v313 = vunpack.c.l.b16 %v117
    %v314 = vunpack.c.l.b16 %v118
    %v315 = vunpack.c.l.b16 %v119
    %v316 = vunpack.c.l.b16 %v120
    %v317 = vunpack.c.l.b16 %v121
    %v318 = vunpack.c.l.b16 %v122
    %v319 = vunpack.c.l.b16 %v123
    %v320 = vunpack.c.l.b16 %v124
    %v321 = vunpack.c.l.b16 %v125
    %v322 = vunpack.c.l.b16 %v126
    %v323 = vunpack.c.l.b16 %v127
    %v324 = vpack.c.b16 %v227, %v226
    %v325 = vpack.c.b16 %v229, %v228
    %v326 = vpack.c.b16 %v231, %v230
    %v327 = vpack.c.b16 %v233, %v232
    %v328 = vpack.c.b16 %v235, %v234
    %v329 = vpack.c.b16 %v237, %v236
    %v330 = vpack.c.b16 %v239, %v238
    %v331 = vpack.c.b16 %v241, %v240
    %v332 = vpack.c.b16 %v243, %v242
    %v333 = vpack.c.b16 %v245, %v244
    %v334 = vpack.c.b16 %v247, %v246
    %v335 = vpack.c.b16 %v249, %v248
    %v336 = vpack.c.b16 %v251, %v250
    %v337 = vpack.c.b16 %v253, %v252
    %v338 = vpack.c.b16 %v255, %v254
    %v339 = vpack.c.b16 %v257, %v256
    %v340 = vpack.c.b16 %v259, %v258
    %v341 = vpack.c.b16 %v261, %v260
    %v342 = vpack.c.b16 %v263, %v262
    %v343 = vpack.c.b16 %v265, %v264
    %v344 = vpack.c.b16 %v267, %v266
    %v345 = vpack.c.b16 %v269, %v268
    %v346 = vpack.c.b16 %v271, %v270
    %v347 = vpack.c.b16 %v273, %v272
    %v348 = vpack.c.b16 %v275, %v274
    %v349 = vpack.c.b16 %v277, %v276
    %v350 = vpack.c.b16 %v279, %v278
    %v351 = vpack.c.b16 %v281, %v280
    %v352 = vpack.c.b16 %v283, %v282
    %v353 = vpack.c.b16 %v285, %v284
    %v354 = vpack.c.b16 %v287, %v286
    %v355 = vpack.c.b16 %v289, %v288
    %v356 = vpack.c.b16 %v291, %v290
    %v357 = vpack.c.b16 %v293, %v292
    %v358 = vpack.c.b16 %v295, %v294
    %v359 = vpack.c.b16 %v297, %v296
    %v360 = vpack.c.b16 %v299, %v298
    %v361 = vpack.c.b16 %v301, %v300
    %v362 = vpack.c.b16 %v303, %v302
    %v363 = vpack.c.b16 %v305, %v304
    %v364 = vpack.c.b16 %v307, %v306
    %v365 = vpack.c.b16 %v309, %v308
    %v366 = vpack.c.b16 %v311, %v310
    %v367 = vpack.c.b16 %v313, %v312
    %v368 = vpack.c.b16 %v315, %v314
    %v369 = vpack.c.b16 %v317, %v316
    %v370 = vpack.c.b16 %v319, %v318
    %v371 = vpack.c.b16 %v321, %v320
    %v372 = vpack.c.b16 %v323, %v322
    %vm422 = vcmask 130048
    %v424 = vsel %vm422, %v29, 0
    %426 = vmatpush.bf16.msra.mxu0 %v331
    %427 = vmatpush.bf16.msra.mxu0 %v330
    %428 = vmatpush.bf16.msra.mxu0 %v329
    %429 = vmatpush.bf16.msra.mxu0 %v328
    %430 = vmatpush.bf16.msra.mxu0 %v327
    %431 = vmatpush.bf16.msra.mxu0 %v326
    %432 = vmatpush.bf16.msra.mxu0 %v325
    %433 = vmatpush.bf16.msra.mxu0 %v324
    %434 = vmatmul.bf16.gmra.mxu0 %v23
    %v435 = vpop.f32.mrf.mxu0
    %v436 = vadd.f32 0.0, %v435
    %v437 = vpop.f32.mrf.mxu0
    %438 = vdwg.mxu0
    %439 = vmatpush.bf16.msra.mxu0 %v339
    %440 = vmatpush.bf16.msra.mxu0 %v338
    %441 = vmatpush.bf16.msra.mxu0 %v337
    %442 = vmatpush.bf16.msra.mxu0 %v336
    %443 = vmatpush.bf16.msra.mxu0 %v335
    %444 = vmatpush.bf16.msra.mxu0 %v334
    %445 = vmatpush.bf16.msra.mxu0 %v333
    %446 = vmatpush.bf16.msra.mxu0 %v332
    %447 = vmatmul.bf16.gmra.mxu0 %v24
    %v448 = vpop.f32.mrf.mxu0
    %v449 = vadd.f32 %v436, %v448
    %v450 = vpop.f32.mrf.mxu0
    %451 = vdwg.mxu0
    %452 = vmatpush.bf16.msra.mxu0 %v347
    %453 = vmatpush.bf16.msra.mxu0 %v346
    %454 = vmatpush.bf16.msra.mxu0 %v345
    %455 = vmatpush.bf16.msra.mxu0 %v344
    %456 = vmatpush.bf16.msra.mxu0 %v343
    %457 = vmatpush.bf16.msra.mxu0 %v342
    %458 = vmatpush.bf16.msra.mxu0 %v341
    %459 = vmatpush.bf16.msra.mxu0 %v340
    %460 = vmatmul.bf16.gmra.mxu0 %v25
    %v461 = vpop.f32.mrf.mxu0
    %v462 = vadd.f32 %v449, %v461
    %v463 = vpop.f32.mrf.mxu0
    %464 = vdwg.mxu0
    %465 = vmatpush.bf16.msra.mxu0 %v355
    %466 = vmatpush.bf16.msra.mxu0 %v354
    %467 = vmatpush.bf16.msra.mxu0 %v353
    %468 = vmatpush.bf16.msra.mxu0 %v352
    %469 = vmatpush.bf16.msra.mxu0 %v351
    %470 = vmatpush.bf16.msra.mxu0 %v350
    %471 = vmatpush.bf16.msra.mxu0 %v349
    %472 = vmatpush.bf16.msra.mxu0 %v348
    %473 = vmatmul.bf16.gmra.mxu0 %v26
    %v474 = vpop.f32.mrf.mxu0
    %v475 = vadd.f32 %v462, %v474
    %v476 = vpop.f32.mrf.mxu0
    %477 = vdwg.mxu0
    %478 = vmatpush.bf16.msra.mxu0 %v363
    %479 = vmatpush.bf16.msra.mxu0 %v362
    %480 = vmatpush.bf16.msra.mxu0 %v361
    %481 = vmatpush.bf16.msra.mxu0 %v360
    %482 = vmatpush.bf16.msra.mxu0 %v359
    %483 = vmatpush.bf16.msra.mxu0 %v358
    %484 = vmatpush.bf16.msra.mxu0 %v357
    %485 = vmatpush.bf16.msra.mxu0 %v356
    %486 = vmatmul.bf16.gmra.mxu0 %v27
    %v487 = vpop.f32.mrf.mxu0
    %v488 = vadd.f32 %v475, %v487
    %v489 = vpop.f32.mrf.mxu0
    %490 = vdwg.mxu0
    %491 = vmatpush.bf16.msra.mxu0 %v371
    %492 = vmatpush.bf16.msra.mxu0 %v370
    %493 = vmatpush.bf16.msra.mxu0 %v369
    %494 = vmatpush.bf16.msra.mxu0 %v368
    %495 = vmatpush.bf16.msra.mxu0 %v367
    %496 = vmatpush.bf16.msra.mxu0 %v366
    %497 = vmatpush.bf16.msra.mxu0 %v365
    %498 = vmatpush.bf16.msra.mxu0 %v364
    %499 = vmatmul.bf16.gmra.mxu0 %v28
    %v500 = vpop.f32.mrf.mxu0
    %v501 = vadd.f32 %v488, %v500
    %v502 = vpop.f32.mrf.mxu0
    %503 = vdwg.mxu0
    %504 = vmatpush.bf16.msra.mxu0 0
    %505 = vmatpush.bf16.msra.mxu0 0
    %506 = vmatpush.bf16.msra.mxu0 0
    %507 = vmatpush.bf16.msra.mxu0 0
    %508 = vmatpush.bf16.msra.mxu0 0
    %509 = vmatpush.bf16.msra.mxu0 0
    %510 = vmatpush.bf16.msra.mxu0 0
    %511 = vmatpush.bf16.msra.mxu0 %v372
    %512 = vmatmul.bf16.gmra.mxu0 %v424
    %v513 = vpop.f32.mrf.mxu0
    %v514 = vadd.f32 %v501, %v513
    %v515 = vpop.f32.mrf.mxu0
    %516 = vdwg.mxu0
    %v517 = vmax.f32 %v514, 0.0
    %v518 = vpack.c.bf16 %v517, %v517
    %v519 = vld [vmem:[%s2] sm:$0xf]
    %v520 = vld [vmem:[%s2 + $0x4] sm:$0xf]
    %v521 = vld [vmem:[%s2 + $0x8] sm:$0xf]
    %v522 = vld [vmem:[%s2 + $0xc] sm:$0xf]
    %v523 = vld [vmem:[%s2 + $0x10] sm:$0xf]
    %v524 = vld [vmem:[%s2 + $0x14] sm:$0xf]
    %v525 = vld [vmem:[%s2 + $0x18] sm:$0xf]
    %v526 = vld [vmem:[%s2 + $0x1c] sm:$0xf]
    %v527 = vld [vmem:[%s2 + $0x20] sm:$0xf]
    %v528 = vld [vmem:[%s2 + $0x24] sm:$0xf]
    %v529 = vld [vmem:[%s2 + $0x28] sm:$0xf]
    %v530 = vld [vmem:[%s2 + $0x2c] sm:$0xf]
    %v531 = vld [vmem:[%s2 + $0x30] sm:$0xf]
    %v532 = vld [vmem:[%s2 + $0x34] sm:$0xf]
    %v533 = vld [vmem:[%s2 + $0x38] sm:$0xf]
    %v534 = vld [vmem:[%s2 + $0x3c] sm:$0xf]
    %v551 = vunpack.c.l.b16 %v519
    %v552 = vunpack.c.l.b16 %v520
    %v553 = vunpack.c.l.b16 %v521
    %v554 = vunpack.c.l.b16 %v522
    %v555 = vunpack.c.l.b16 %v523
    %v556 = vunpack.c.l.b16 %v524
    %v557 = vunpack.c.l.b16 %v525
    %v558 = vunpack.c.l.b16 %v526
    %v559 = vunpack.c.l.b16 %v527
    %v560 = vunpack.c.l.b16 %v528
    %v561 = vunpack.c.l.b16 %v529
    %v562 = vunpack.c.l.b16 %v530
    %v563 = vunpack.c.l.b16 %v531
    %v564 = vunpack.c.l.b16 %v532
    %v565 = vunpack.c.l.b16 %v533
    %v566 = vunpack.c.l.b16 %v534
    %v567 = vpack.c.b16 %v552, %v551
    %v568 = vpack.c.b16 %v554, %v553
    %v569 = vpack.c.b16 %v556, %v555
    %v570 = vpack.c.b16 %v558, %v557
    %v571 = vpack.c.b16 %v560, %v559
    %v572 = vpack.c.b16 %v562, %v561
    %v573 = vpack.c.b16 %v564, %v563
    %v574 = vpack.c.b16 %v566, %v565
    %583 = vmatpush.bf16.msra.mxu0 %v574
    %584 = vmatpush.bf16.msra.mxu0 %v573
    %585 = vmatpush.bf16.msra.mxu0 %v572
    %586 = vmatpush.bf16.msra.mxu0 %v571
    %587 = vmatpush.bf16.msra.mxu0 %v570
    %588 = vmatpush.bf16.msra.mxu0 %v569
    %589 = vmatpush.bf16.msra.mxu0 %v568
    %590 = vmatpush.bf16.msra.mxu0 %v567
    %591 = vmatmul.bf16.gmra.mxu0 %v518
    %v592 = vpop.f32.mrf.mxu0
    %v593 = vadd.f32 0.0, %v592
    %v594 = vpop.f32.mrf.mxu0
    %595 = vdwg.mxu0
    %v596 = vlaneseq
    %v597 = vand.u32 %v596, 127
    %vm598 = vcmp.lt.s32.totalorder %v597, 10
    %v599 = vsel %vm598, %v593, -inf
    %600 = vmax.xlane.f32.xlu0 %v599
    %v601 = vpop.xlane.xlu0 %600
    %v602 = vsub.f32 %v599, %v601
    %v603 = vmul.f32 %v602, 1.442695
    %v604 = vpow.pop %v603
    %605 = vadd.xlane.f32.xlu0 %v604
    %v606 = vpop.xlane.xlu0 %605
    %v607 = vlog2.pop %v606
    %v608 = vmul.f32 %v607, 0.6931472
    %v609 = vsub.f32 %v602, %v608
    %vm610 = vcmask 80896
    %611 = vst.msk [vmem:[#allocation2] sm:$0xff] %vm610, %v609
    // Predicated region
    $region14: #{smolnet_forward.1} parent=1 // pred_check
      _
    $region15: #{smolnet_forward.1} parent=1 // pred_check_branch
      %613 = sbr.rel (0) target = $region17
    $region16: #{smolnet_forward.1} parent=1 // pred_region
      %615 = vsyncadd [#allocation3], 0
      %s617 = sshll.u32 [#allocation2], 4
      %s618 = int_to_ptr.vmem [resolvable:$true] %s617
      %s619 = sshll.u32 %s3, 4
      %s620 = int_to_ptr.hbm [resolvable:$true] %s619
      %622 = dma.vmem_to_hbm [thread:$0]  %s618, 128, %s620, [#allocation3]
    $region17: #{smolnet_forward.1} parent=1 // pred_fallthru
      _
    // Predicated region
    $region18: #{smolnet_forward.1} parent=1 // pred_check
      _
    $region19: #{smolnet_forward.1} parent=1 // pred_check_branch
      %624 = sbr.rel (0) target = $region21
    $region20: #{smolnet_forward.1} parent=1 // pred_region
      %626 = dma.done [#allocation3], 128
    $region21: #{smolnet_forward.1} parent=1 // pred_fallthru
      _
    %627 = vsyncpa [#allocation3], 1

</llo_original>
